<compile_context>
chip_gen: v6e
topology: v6e:2x2x1
jax: 0.10.0
libtpu: 0.0.40
codegen_flags: <defaults>
</compile_context>

<pallas_src>
import jax
import jax.numpy as jnp
from jax.experimental import pallas as pl
from jax.experimental.pallas import tpu as pltpu

DIMS = (24, 128, 64, 32, 16, 4)
CHUNK = 128  # rows per inner step; (128,128) f32 intermediate = 16 vregs, stays in registers


def mlp_kernel(x_ref,
               w1_ref, b1_ref,
               w2_ref, b2_ref,
               w3_ref, b3_ref,
               w4_ref, b4_ref,
               w5_ref, b5_ref,
               o_ref):
    """One batch tile of the fused MLP. Weights are bf16 (in, out); biases f32 (1, out)."""
    # Weights/biases are tiny (~30 KiB total); load once per grid step.
    w1 = w1_ref[...]; b1 = b1_ref[...]
    w2 = w2_ref[...]; b2 = b2_ref[...]
    w3 = w3_ref[...]; b3 = b3_ref[...]
    w4 = w4_ref[...]; b4 = b4_ref[...]
    w5 = w5_ref[...]; b5 = b5_ref[...]

    n_chunks = x_ref.shape[0] // CHUNK  # static

    def layer(h, w, b, relu=True):
        # bf16 operands on the MXU, f32 accumulate; bias-add / ReLU stay f32.
        y = jnp.dot(h.astype(jnp.bfloat16), w,
                    preferred_element_type=jnp.float32) + b
        return jnp.maximum(y, 0.0) if relu else y

    def chunk_body(c, carry):
        r = pl.multiple_of(c * CHUNK, CHUNK)
        h = x_ref[pl.ds(r, CHUNK), :]
        h = layer(h, w1, b1)
        h = layer(h, w2, b2)
        h = layer(h, w3, b3)
        h = layer(h, w4, b4)
        h = layer(h, w5, b5, relu=False)
        # TODO(synk): out last-dim is 4 (masked vst + thin writeback); lane-dense
        # repack only worth it if this writeback ever shows on the critical path.
        o_ref[pl.ds(r, CHUNK), :] = h.astype(o_ref.dtype)
        return carry

    jax.lax.fori_loop(0, n_chunks, chunk_body, 0, unroll=True)


def inverse_neural_network(x, params, *, tile_b=1024):
    """x: (B, 24) f32; params: list of (W(in,out) f32, b(1,out) f32). Returns (B, 4) f32."""
    B, F = x.shape
    assert F == DIMS[0]

    # Store MXU operands as bf16 once; biases stay f32.
    flat = []
    for (w, b) in params:
        flat.append(w.astype(jnp.bfloat16))
        flat.append(b)

    # Batch tile: multiple of CHUNK, no larger than needed for this B.
    tile_b = max(CHUNK, (tile_b // CHUNK) * CHUNK)
    tile_b = min(tile_b, pl.cdiv(B, CHUNK) * CHUNK)

    padded_b = pl.cdiv(B, tile_b) * tile_b
    if padded_b != B:
        x = jnp.pad(x, ((0, padded_b - B), (0, 0)))
    num_tiles = padded_b // tile_b

    flops = 2 * padded_b * sum(DIMS[i] * DIMS[i + 1] for i in range(len(DIMS) - 1))
    bytes_accessed = (padded_b * (DIMS[0] * 4 + DIMS[-1] * 4)
                      + sum(int(a.size) * a.dtype.itemsize for a in flat))
    cost = pl.CostEstimate(flops=flops, transcendentals=0,
                           bytes_accessed=bytes_accessed)

    # Constant-index specs: same block every grid step -> weights stay VMEM-resident.
    weight_specs = [pl.BlockSpec(a.shape, lambda i: (0, 0)) for a in flat]

    out = pl.pallas_call(
        mlp_kernel,
        out_shape=jax.ShapeDtypeStruct((padded_b, DIMS[-1]), jnp.float32),
        grid=(num_tiles,),
        in_specs=[pl.BlockSpec((tile_b, DIMS[0]), lambda i: (i, 0))] + weight_specs,
        out_specs=pl.BlockSpec((tile_b, DIMS[-1]), lambda i: (i, 0)),
        compiler_params=pltpu.CompilerParams(
            dimension_semantics=("parallel",),          # shards batch across TCs on v7x
            vmem_limit_bytes=32 * 1024 * 1024,          # explicit; safe on v5e/v6e/v7x
        ),
        cost_estimate=cost,
    )(x, *flat)
    return out[:B]


def init_params(key):
    """Deterministic params matching nn.Linear; W stored transposed as (in, out)."""
    params = []
    for i in range(len(DIMS) - 1):
        fan_in, fan_out = DIMS[i], DIMS[i + 1]
        key, kw, kb = jax.random.split(key, 3)
        bound = 1.0 / jnp.sqrt(float(fan_in))
        w = jax.random.uniform(kw, (fan_in, fan_out), jnp.float32, -bound, bound)
        b = jax.random.uniform(kb, (1, fan_out), jnp.float32, -bound, bound)
        params.append((w, b))
    return params


def reference_forward(x, params, *, bf16_weights=False):
    """Plain-JAX reference (mirrors the PyTorch forward)."""
    h = x
    for i, (w, b) in enumerate(params):
        if bf16_weights:
            h = jnp.dot(h.astype(jnp.bfloat16), w.astype(jnp.bfloat16),
                        preferred_element_type=jnp.float32) + b
        else:
            h = h @ w + b
        if i < len(params) - 1:
            h = jnp.maximum(h, 0.0)
    return h


if __name__ == "__main__":
    key = jax.random.PRNGKey(0)
    key, kx1, kx2 = jax.random.split(key, 3)
    params = init_params(key)

    # Small batch (pads up to one 128-row tile).
    x_small = jax.random.normal(kx1, (8, DIMS[0]), dtype=jnp.float32)
    out_small = jax.block_until_ready(inverse_neural_network(x_small, params))
    assert out_small.shape == (8, DIMS[-1]), out_small.shape

    # Larger, non-divisible batch to exercise the multi-tile grid + tail padding.
    x_big = jax.random.normal(kx2, (2500, DIMS[0]), dtype=jnp.float32)
    out_big = jax.block_until_ready(
        inverse_neural_network(x_big, params, tile_b=1024))
    assert out_big.shape == (2500, DIMS[-1]), out_big.shape

    for x, out in ((x_small, out_small), (x_big, out_big)):
        ref_bf16 = reference_forward(x, params, bf16_weights=True)
        ref_f32 = reference_forward(x, params)
        assert jnp.allclose(out, ref_bf16, atol=2e-3, rtol=2e-3), \
            "mismatch vs bf16-matched reference"
        assert jnp.allclose(out, ref_f32, atol=5e-2, rtol=5e-2), \
            "mismatch vs f32 reference"

    print("KERNEL_OK")
</pallas_src>

<mosaic_0001>
module attributes {stable_mosaic.version = 11 : i64} {
  func.func @mlp_kernel(%arg0: i32, %arg1: memref<128x24xf32, #tpu.memory_space<vmem>>, %arg2: memref<24x128xbf16, #tpu.memory_space<vmem>>, %arg3: memref<1x128xf32, #tpu.memory_space<vmem>>, %arg4: memref<128x64xbf16, #tpu.memory_space<vmem>>, %arg5: memref<1x64xf32, #tpu.memory_space<vmem>>, %arg6: memref<64x32xbf16, #tpu.memory_space<vmem>>, %arg7: memref<1x32xf32, #tpu.memory_space<vmem>>, %arg8: memref<32x16xbf16, #tpu.memory_space<vmem>>, %arg9: memref<1x16xf32, #tpu.memory_space<vmem>>, %arg10: memref<16x4xbf16, #tpu.memory_space<vmem>>, %arg11: memref<1x4xf32, #tpu.memory_space<vmem>>, %arg12: memref<128x4xf32, #tpu.memory_space<vmem>>) attributes {dimension_semantics = [#tpu.dimension_semantics<parallel>], iteration_bounds = array<i64: 1>, scalar_prefetch = 0 : i64, scratch_operands = 0 : i64, tpu.core_type = #tpu.core_type<tc>, window_params = [{transform_indices = @transform_0, window_bounds = array<i64: 128, 24>}, {pipeline_mode = #tpu.pipeline_mode<synchronous>, transform_indices = @transform_1, window_bounds = array<i64: 24, 128>}, {pipeline_mode = #tpu.pipeline_mode<synchronous>, transform_indices = @transform_2, window_bounds = array<i64: 1, 128>}, {pipeline_mode = #tpu.pipeline_mode<synchronous>, transform_indices = @transform_3, window_bounds = array<i64: 128, 64>}, {pipeline_mode = #tpu.pipeline_mode<synchronous>, transform_indices = @transform_4, window_bounds = array<i64: 1, 64>}, {pipeline_mode = #tpu.pipeline_mode<synchronous>, transform_indices = @transform_5, window_bounds = array<i64: 64, 32>}, {pipeline_mode = #tpu.pipeline_mode<synchronous>, transform_indices = @transform_6, window_bounds = array<i64: 1, 32>}, {pipeline_mode = #tpu.pipeline_mode<synchronous>, transform_indices = @transform_7, window_bounds = array<i64: 32, 16>}, {pipeline_mode = #tpu.pipeline_mode<synchronous>, transform_indices = @transform_8, window_bounds = array<i64: 1, 16>}, {pipeline_mode = #tpu.pipeline_mode<synchronous>, transform_indices = @transform_9, window_bounds = array<i64: 16, 4>}, {pipeline_mode = #tpu.pipeline_mode<synchronous>, transform_indices = @transform_10, window_bounds = array<i64: 1, 4>}, {transform_indices = @transform_11, window_bounds = array<i64: 128, 4>}]} {
    %c0 = arith.constant 0 : index
    %c0_0 = arith.constant 0 : index
    %0 = vector.load %arg2[%c0, %c0_0] : memref<24x128xbf16, #tpu.memory_space<vmem>>, vector<24x128xbf16>
    %c0_1 = arith.constant 0 : index
    %c0_2 = arith.constant 0 : index
    %1 = vector.load %arg3[%c0_1, %c0_2] : memref<1x128xf32, #tpu.memory_space<vmem>>, vector<1x128xf32>
    %c0_3 = arith.constant 0 : index
    %c0_4 = arith.constant 0 : index
    %2 = vector.load %arg4[%c0_3, %c0_4] : memref<128x64xbf16, #tpu.memory_space<vmem>>, vector<128x64xbf16>
    %c0_5 = arith.constant 0 : index
    %c0_6 = arith.constant 0 : index
    %3 = vector.load %arg5[%c0_5, %c0_6] : memref<1x64xf32, #tpu.memory_space<vmem>>, vector<1x64xf32>
    %c0_7 = arith.constant 0 : index
    %c0_8 = arith.constant 0 : index
    %4 = vector.load %arg6[%c0_7, %c0_8] : memref<64x32xbf16, #tpu.memory_space<vmem>>, vector<64x32xbf16>
    %c0_9 = arith.constant 0 : index
    %c0_10 = arith.constant 0 : index
    %5 = vector.load %arg7[%c0_9, %c0_10] : memref<1x32xf32, #tpu.memory_space<vmem>>, vector<1x32xf32>
    %c0_11 = arith.constant 0 : index
    %c0_12 = arith.constant 0 : index
    %6 = vector.load %arg8[%c0_11, %c0_12] : memref<32x16xbf16, #tpu.memory_space<vmem>>, vector<32x16xbf16>
    %c0_13 = arith.constant 0 : index
    %c0_14 = arith.constant 0 : index
    %7 = vector.load %arg9[%c0_13, %c0_14] : memref<1x16xf32, #tpu.memory_space<vmem>>, vector<1x16xf32>
    %c0_15 = arith.constant 0 : index
    %c0_16 = arith.constant 0 : index
    %8 = vector.load %arg10[%c0_15, %c0_16] : memref<16x4xbf16, #tpu.memory_space<vmem>>, vector<16x4xbf16>
    %c0_17 = arith.constant 0 : index
    %c0_18 = arith.constant 0 : index
    %9 = vector.load %arg11[%c0_17, %c0_18] : memref<1x4xf32, #tpu.memory_space<vmem>>, vector<1x4xf32>
    %c0_i32 = arith.constant 0 : i32
    %c128_i32 = arith.constant 128 : i32
    %10 = arith.muli %c0_i32, %c128_i32 : i32
    %11 = tpu.assume_multiple %10, 128 : i32
    %12 = arith.index_cast %11 : i32 to index
    %c0_19 = arith.constant 0 : index
    %13 = vector.load %arg1[%12, %c0_19] : memref<128x24xf32, #tpu.memory_space<vmem>>, vector<128x24xf32>
    %14 = arith.truncf %13 : vector<128x24xf32> to vector<128x24xbf16>
    %cst = arith.constant dense<0.000000e+00> : vector<128x128xf32>
    %15 = tpu.matmul %14, %0, %cst {dimension_numbers = #tpu.dot_dimension_numbers<[1], [0], [0], [1], [0, 0, 1, 1], [], []>} : vector<128x24xbf16>, vector<24x128xbf16>, vector<128x128xf32> -> vector<128x128xf32>
    %16 = vector.broadcast %1 : vector<1x128xf32> to vector<128x128xf32>
    %17 = arith.addf %15, %16 : vector<128x128xf32>
    %cst_20 = arith.constant 0.000000e+00 : f32
    %18 = vector.broadcast %cst_20 : f32 to vector<128x128xf32>
    %19 = arith.maximumf %17, %18 : vector<128x128xf32>
    %20 = arith.truncf %19 : vector<128x128xf32> to vector<128x128xbf16>
    %cst_21 = arith.constant dense<0.000000e+00> : vector<128x64xf32>
    %21 = tpu.matmul %20, %2, %cst_21 {dimension_numbers = #tpu.dot_dimension_numbers<[1], [0], [0], [1], [0, 0, 1, 1], [], []>} : vector<128x128xbf16>, vector<128x64xbf16>, vector<128x64xf32> -> vector<128x64xf32>
    %22 = vector.broadcast %3 : vector<1x64xf32> to vector<128x64xf32>
    %23 = arith.addf %21, %22 : vector<128x64xf32>
    %cst_22 = arith.constant 0.000000e+00 : f32
    %24 = vector.broadcast %cst_22 : f32 to vector<128x64xf32>
    %25 = arith.maximumf %23, %24 : vector<128x64xf32>
    %26 = arith.truncf %25 : vector<128x64xf32> to vector<128x64xbf16>
    %cst_23 = arith.constant dense<0.000000e+00> : vector<128x32xf32>
    %27 = tpu.matmul %26, %4, %cst_23 {dimension_numbers = #tpu.dot_dimension_numbers<[1], [0], [0], [1], [0, 0, 1, 1], [], []>} : vector<128x64xbf16>, vector<64x32xbf16>, vector<128x32xf32> -> vector<128x32xf32>
    %28 = vector.broadcast %5 : vector<1x32xf32> to vector<128x32xf32>
    %29 = arith.addf %27, %28 : vector<128x32xf32>
    %cst_24 = arith.constant 0.000000e+00 : f32
    %30 = vector.broadcast %cst_24 : f32 to vector<128x32xf32>
    %31 = arith.maximumf %29, %30 : vector<128x32xf32>
    %32 = arith.truncf %31 : vector<128x32xf32> to vector<128x32xbf16>
    %cst_25 = arith.constant dense<0.000000e+00> : vector<128x16xf32>
    %33 = tpu.matmul %32, %6, %cst_25 {dimension_numbers = #tpu.dot_dimension_numbers<[1], [0], [0], [1], [0, 0, 1, 1], [], []>} : vector<128x32xbf16>, vector<32x16xbf16>, vector<128x16xf32> -> vector<128x16xf32>
    %34 = vector.broadcast %7 : vector<1x16xf32> to vector<128x16xf32>
    %35 = arith.addf %33, %34 : vector<128x16xf32>
    %cst_26 = arith.constant 0.000000e+00 : f32
    %36 = vector.broadcast %cst_26 : f32 to vector<128x16xf32>
    %37 = arith.maximumf %35, %36 : vector<128x16xf32>
    %38 = arith.truncf %37 : vector<128x16xf32> to vector<128x16xbf16>
    %cst_27 = arith.constant dense<0.000000e+00> : vector<128x4xf32>
    %39 = tpu.matmul %38, %8, %cst_27 {dimension_numbers = #tpu.dot_dimension_numbers<[1], [0], [0], [1], [0, 0, 1, 1], [], []>} : vector<128x16xbf16>, vector<16x4xbf16>, vector<128x4xf32> -> vector<128x4xf32>
    %40 = vector.broadcast %9 : vector<1x4xf32> to vector<128x4xf32>
    %41 = arith.addf %39, %40 : vector<128x4xf32>
    %42 = arith.index_cast %11 : i32 to index
    %c0_28 = arith.constant 0 : index
    %43 = vector.load %arg12[%42, %c0_28] : memref<128x4xf32, #tpu.memory_space<vmem>>, vector<128x4xf32>
    tpu.vector_store %arg12[%42, %c0_28], %41 {strides = array<i32>} : memref<128x4xf32, #tpu.memory_space<vmem>>, vector<128x4xf32>,
    %c1_i32 = arith.constant 1 : i32
    return
  }
  func.func @transform_0(%arg0: i32) -> (i32, i32) {
    %c0_i32 = arith.constant 0 : i32
    %c0_i32_0 = arith.constant 0 : i32
    return %arg0, %c0_i32 : i32, i32
  }
  func.func @transform_1(%arg0: i32) -> (i32, i32) {
    %c0_i32 = arith.constant 0 : i32
    %c0_i32_0 = arith.constant 0 : i32
    %c0_i32_1 = arith.constant 0 : i32
    return %c0_i32, %c0_i32_0 : i32, i32
  }
  func.func @transform_2(%arg0: i32) -> (i32, i32) {
    %c0_i32 = arith.constant 0 : i32
    %c0_i32_0 = arith.constant 0 : i32
    %c0_i32_1 = arith.constant 0 : i32
    return %c0_i32, %c0_i32_0 : i32, i32
  }
  func.func @transform_3(%arg0: i32) -> (i32, i32) {
    %c0_i32 = arith.constant 0 : i32
    %c0_i32_0 = arith.constant 0 : i32
    %c0_i32_1 = arith.constant 0 : i32
    return %c0_i32, %c0_i32_0 : i32, i32
  }
  func.func @transform_4(%arg0: i32) -> (i32, i32) {
    %c0_i32 = arith.constant 0 : i32
    %c0_i32_0 = arith.constant 0 : i32
    %c0_i32_1 = arith.constant 0 : i32
    return %c0_i32, %c0_i32_0 : i32, i32
  }
  func.func @transform_5(%arg0: i32) -> (i32, i32) {
    %c0_i32 = arith.constant 0 : i32
    %c0_i32_0 = arith.constant 0 : i32
    %c0_i32_1 = arith.constant 0 : i32
    return %c0_i32, %c0_i32_0 : i32, i32
  }
  func.func @transform_6(%arg0: i32) -> (i32, i32) {
    %c0_i32 = arith.constant 0 : i32
    %c0_i32_0 = arith.constant 0 : i32
    %c0_i32_1 = arith.constant 0 : i32
    return %c0_i32, %c0_i32_0 : i32, i32
  }
  func.func @transform_7(%arg0: i32) -> (i32, i32) {
    %c0_i32 = arith.constant 0 : i32
    %c0_i32_0 = arith.constant 0 : i32
    %c0_i32_1 = arith.constant 0 : i32
    return %c0_i32, %c0_i32_0 : i32, i32
  }
  func.func @transform_8(%arg0: i32) -> (i32, i32) {
    %c0_i32 = arith.constant 0 : i32
    %c0_i32_0 = arith.constant 0 : i32
    %c0_i32_1 = arith.constant 0 : i32
    return %c0_i32, %c0_i32_0 : i32, i32
  }
  func.func @transform_9(%arg0: i32) -> (i32, i32) {
    %c0_i32 = arith.constant 0 : i32
    %c0_i32_0 = arith.constant 0 : i32
    %c0_i32_1 = arith.constant 0 : i32
    return %c0_i32, %c0_i32_0 : i32, i32
  }
  func.func @transform_10(%arg0: i32) -> (i32, i32) {
    %c0_i32 = arith.constant 0 : i32
    %c0_i32_0 = arith.constant 0 : i32
    %c0_i32_1 = arith.constant 0 : i32
    return %c0_i32, %c0_i32_0 : i32, i32
  }
  func.func @transform_11(%arg0: i32) -> (i32, i32) {
    %c0_i32 = arith.constant 0 : i32
    %c0_i32_0 = arith.constant 0 : i32
    return %arg0, %c0_i32 : i32, i32
  }
}

</mosaic_0001>

<llo_original>
// kernel: tpu_custom_call.1
$region0: #{tpu_custom_call.1}
  #allocation0 [shape = 'u32[]', space=smem, size = 0x4, offset = 0x4, fixed_abs, tag = 'smem constant byte address 0x4 - core index']
  #allocation1 [shape = 'u32[144,128]{1,0:T(1,128)}', space=vmem, size = 0x12000, scoped, tag = 'internal scratch']
  %s0 = inlined_call_operand.vmem [shape: f32[128,24], index: 0, kind: input, shape index: {}]
  %s1 = inlined_call_operand.vmem [shape: bf16[24,128], index: 1, kind: input, shape index: {}]
  %s2 = inlined_call_operand.vmem [shape: f32[1,128], index: 2, kind: input, shape index: {}]
  %s3 = inlined_call_operand.vmem [shape: bf16[128,64], index: 3, kind: input, shape index: {}]
  %s4 = inlined_call_operand.vmem [shape: f32[1,64], index: 4, kind: input, shape index: {}]
  %s5 = inlined_call_operand.vmem [shape: bf16[64,32], index: 5, kind: input, shape index: {}]
  %s6 = inlined_call_operand.vmem [shape: f32[1,32], index: 6, kind: input, shape index: {}]
  %s7 = inlined_call_operand.vmem [shape: bf16[32,16], index: 7, kind: input, shape index: {}]
  %s8 = inlined_call_operand.vmem [shape: f32[1,16], index: 8, kind: input, shape index: {}]
  %s9 = inlined_call_operand.vmem [shape: bf16[16,4], index: 9, kind: input, shape index: {}]
  %s10 = inlined_call_operand.vmem [shape: f32[1,4], index: 10, kind: input, shape index: {}]
  %s11 = inlined_call_operand.vmem [shape: f32[128,4], index: 11, kind: output, shape index: {}]
  %s12 = sld [smem:[#allocation0]]
  $region54: #{tpu_custom_call.1} parent=0
    _
  %s14 = ssub.s32 1, %s12
  %s15 = scalar_select 0, %s14, %s12
  // Predicated region
  $region2: #{tpu_custom_call.1} parent=0 // pred_check
    _
  $region3: #{tpu_custom_call.1} parent=0 // pred_check_branch
    %17 = sbr.rel (0) target = $region5
  $region4: #{tpu_custom_call.1} parent=0 // pred_region
    _
  $region5: #{tpu_custom_call.1} parent=0 // pred_fallthru
    _
  // Predicated region
  $region6: #{tpu_custom_call.1} parent=0 // pred_check
    _
  $region7: #{tpu_custom_call.1} parent=0 // pred_check_branch
    %19 = sbr.rel (0) target = $region9
  $region8: #{tpu_custom_call.1} parent=0 // pred_region
    _
  $region9: #{tpu_custom_call.1} parent=0 // pred_fallthru
    _
  // Predicated region
  $region10: #{tpu_custom_call.1} parent=0 // pred_check
    _
  $region11: #{tpu_custom_call.1} parent=0 // pred_check_branch
    %21 = sbr.rel (0) target = $region13
  $region12: #{tpu_custom_call.1} parent=0 // pred_region
    _
  $region13: #{tpu_custom_call.1} parent=0 // pred_fallthru
    _
  // Predicated region
  $region14: #{tpu_custom_call.1} parent=0 // pred_check
    _
  $region15: #{tpu_custom_call.1} parent=0 // pred_check_branch
    %23 = sbr.rel (0) target = $region17
  $region16: #{tpu_custom_call.1} parent=0 // pred_region
    _
  $region17: #{tpu_custom_call.1} parent=0 // pred_fallthru
    _
  // Predicated region
  $region18: #{tpu_custom_call.1} parent=0 // pred_check
    _
  $region19: #{tpu_custom_call.1} parent=0 // pred_check_branch
    %25 = sbr.rel (0) target = $region21
  $region20: #{tpu_custom_call.1} parent=0 // pred_region
    _
  $region21: #{tpu_custom_call.1} parent=0 // pred_fallthru
    _
  // Predicated region
  $region22: #{tpu_custom_call.1} parent=0 // pred_check
    _
  $region23: #{tpu_custom_call.1} parent=0 // pred_check_branch
    %27 = sbr.rel (0) target = $region25
  $region24: #{tpu_custom_call.1} parent=0 // pred_region
    _
  $region25: #{tpu_custom_call.1} parent=0 // pred_fallthru
    _
  // Predicated region
  $region26: #{tpu_custom_call.1} parent=0 // pred_check
    _
  $region27: #{tpu_custom_call.1} parent=0 // pred_check_branch
    %29 = sbr.rel (0) target = $region29
  $region28: #{tpu_custom_call.1} parent=0 // pred_region
    _
  $region29: #{tpu_custom_call.1} parent=0 // pred_fallthru
    _
  // Predicated region
  $region30: #{tpu_custom_call.1} parent=0 // pred_check
    _
  $region31: #{tpu_custom_call.1} parent=0 // pred_check_branch
    %31 = sbr.rel (0) target = $region33
  $region32: #{tpu_custom_call.1} parent=0 // pred_region
    _
  $region33: #{tpu_custom_call.1} parent=0 // pred_fallthru
    _
  // Predicated region
  $region34: #{tpu_custom_call.1} parent=0 // pred_check
    _
  $region35: #{tpu_custom_call.1} parent=0 // pred_check_branch
    %33 = sbr.rel (0) target = $region37
  $region36: #{tpu_custom_call.1} parent=0 // pred_region
    _
  $region37: #{tpu_custom_call.1} parent=0 // pred_fallthru
    _
  // Predicated region
  $region38: #{tpu_custom_call.1} parent=0 // pred_check
    _
  $region39: #{tpu_custom_call.1} parent=0 // pred_check_branch
    %35 = sbr.rel (0) target = $region41
  $region40: #{tpu_custom_call.1} parent=0 // pred_region
    _
  $region41: #{tpu_custom_call.1} parent=0 // pred_fallthru
    _
  // Predicated region
  $region42: #{tpu_custom_call.1} parent=0 // pred_check
    _
  $region43: #{tpu_custom_call.1} parent=0 // pred_check_branch
    %37 = sbr.rel (0) target = $region45
  $region44: #{tpu_custom_call.1} parent=0 // pred_region
    _
  $region45: #{tpu_custom_call.1} parent=0 // pred_fallthru
    _
  %v39 = vld [vmem:[%s1] sm:$0xf]
  %v40 = vld [vmem:[%s1 + $0x4] sm:$0xf]
  %v41 = vld [vmem:[%s1 + $0x8] sm:$0xf]
  %v42 = vld [vmem:[%s2] sm:$0x1]
  %v43 = vld [vmem:[%s3] sm:$0xf]
  %v44 = vld [vmem:[%s3 + $0x4] sm:$0xf]
  %v45 = vld [vmem:[%s3 + $0x8] sm:$0xf]
  %v46 = vld [vmem:[%s3 + $0xc] sm:$0xf]
  %v47 = vld [vmem:[%s3 + $0x10] sm:$0xf]
  %v48 = vld [vmem:[%s3 + $0x14] sm:$0xf]
  %v49 = vld [vmem:[%s3 + $0x18] sm:$0xf]
  %v50 = vld [vmem:[%s3 + $0x1c] sm:$0xf]
  %v51 = vld [vmem:[%s3 + $0x20] sm:$0xf]
  %v52 = vld [vmem:[%s3 + $0x24] sm:$0xf]
  %v53 = vld [vmem:[%s3 + $0x28] sm:$0xf]
  %v54 = vld [vmem:[%s3 + $0x2c] sm:$0xf]
  %v55 = vld [vmem:[%s3 + $0x30] sm:$0xf]
  %v56 = vld [vmem:[%s3 + $0x34] sm:$0xf]
  %v57 = vld [vmem:[%s3 + $0x38] sm:$0xf]
  %v58 = vld [vmem:[%s3 + $0x3c] sm:$0xf]
  %v59 = vld [vmem:[%s4] sm:$0x1]
  %v60 = vld [vmem:[%s5] sm:$0xf]
  %v61 = vld [vmem:[%s5 + $0x4] sm:$0xf]
  %v62 = vld [vmem:[%s5 + $0x8] sm:$0xf]
  %v63 = vld [vmem:[%s5 + $0xc] sm:$0xf]
  %v64 = vld [vmem:[%s5 + $0x10] sm:$0xf]
  %v65 = vld [vmem:[%s5 + $0x14] sm:$0xf]
  %v66 = vld [vmem:[%s5 + $0x18] sm:$0xf]
  %v67 = vld [vmem:[%s5 + $0x1c] sm:$0xf]
  %v68 = vld [vmem:[%s6] sm:$0x1]
  %v69 = vld [vmem:[%s7] sm:$0xf]
  %v70 = vld [vmem:[%s7 + $0x4] sm:$0xf]
  %v71 = vld [vmem:[%s7 + $0x8] sm:$0xf]
  %v72 = vld [vmem:[%s7 + $0xc] sm:$0xf]
  %v73 = vld [vmem:[%s8] sm:$0x1]
  %v74 = vld [vmem:[%s9] sm:$0xf]
  %v75 = vld [vmem:[%s9 + $0x4] sm:$0xf]
  %v76 = vld [vmem:[%s10] sm:$0x1]
  %v77 = vld [vmem:[%s0] sm:$0xff]
  %v78 = vld [vmem:[%s0 + $0x8] sm:$0xff]
  %v79 = vld [vmem:[%s0 + $0x10] sm:$0xff]
  %v80 = vld [vmem:[%s0 + $0x18] sm:$0xff]
  %v81 = vld [vmem:[%s0 + $0x20] sm:$0xff]
  %v82 = vld [vmem:[%s0 + $0x28] sm:$0xff]
  %v83 = vld [vmem:[%s0 + $0x30] sm:$0xff]
  %v84 = vld [vmem:[%s0 + $0x38] sm:$0xff]
  %v85 = vld [vmem:[%s0 + $0x40] sm:$0xff]
  %v86 = vld [vmem:[%s0 + $0x48] sm:$0xff]
  %v87 = vld [vmem:[%s0 + $0x50] sm:$0xff]
  %v88 = vld [vmem:[%s0 + $0x58] sm:$0xff]
  %v89 = vld [vmem:[%s0 + $0x60] sm:$0xff]
  %v90 = vld [vmem:[%s0 + $0x68] sm:$0xff]
  %v91 = vld [vmem:[%s0 + $0x70] sm:$0xff]
  %v92 = vld [vmem:[%s0 + $0x78] sm:$0xff]
  %v93 = vpack.c.bf16 %v78, %v77
  %v94 = vpack.c.bf16 %v80, %v79
  %v95 = vpack.c.bf16 %v82, %v81
  %v96 = vpack.c.bf16 %v84, %v83
  %v97 = vpack.c.bf16 %v86, %v85
  %v98 = vpack.c.bf16 %v88, %v87
  %v99 = vpack.c.bf16 %v90, %v89
  %v100 = vpack.c.bf16 %v92, %v91
  %v102 = vlaneseq
  %v103 = vshrl.u32 %v102, 7
  %v104 = vsub.s32 0, %v103
  %v105 = vrot.slane %v42, %v104
  %v110 = vunpack.c.l.b16 %v39
  %v111 = vunpack.c.l.b16 %v40
  %v112 = vunpack.c.l.b16 %v41
  %v113 = vpack.c.b16 %v111, %v110
  %v114 = vpack.c.b16 %v112, %v112
  %vm116 = vcmask 195584
  %v118 = vsel %vm116, %v93, 0
  %v121 = vsel %vm116, %v94, 0
  %v124 = vsel %vm116, %v95, 0
  %v127 = vsel %vm116, %v96, 0
  %v130 = vsel %vm116, %v97, 0
  %v133 = vsel %vm116, %v98, 0
  %v136 = vsel %vm116, %v99, 0
  %v139 = vsel %vm116, %v100, 0
  %vm141 = vcmask 1043456
  %v143 = vsel %vm141, %v114, 0
  %145 = vmatprep.subr.bf16.mxu0 0
  %146 = vmatpush1.bf16.msra.mxu0 0
  %147 = vmatprep.subr.bf16.mxu0 0
  %148 = vmatpush1.bf16.msra.mxu0 0
  %149 = vmatprep.subr.bf16.mxu0 0
  %150 = vmatpush1.bf16.msra.mxu0 0
  %151 = vmatprep.subr.bf16.mxu0 0
  %152 = vmatpush1.bf16.msra.mxu0 0
  %153 = vmatprep.subr.bf16.mxu0 0
  %154 = vmatpush1.bf16.msra.mxu0 0
  %155 = vmatprep.subr.bf16.mxu0 0
  %156 = vmatpush1.bf16.msra.mxu0 0
  %157 = vmatprep.subr.bf16.mxu0 0
  %158 = vmatpush1.bf16.msra.mxu0 %v143
  %159 = vmatprep.subr.bf16.mxu0 0
  %160 = vmatpush1.bf16.msra.mxu0 %v113
  %161 = vmatprep.subr.bf16.mxu0 0
  %162 = vmatpush2.bf16.msra.mxu0 0
  %163 = vmatprep.subr.bf16.mxu0 0
  %164 = vmatpush2.bf16.msra.mxu0 0
  %165 = vmatprep.subr.bf16.mxu0 0
  %166 = vmatpush2.bf16.msra.mxu0 0
  %167 = vmatprep.subr.bf16.mxu0 0
  %168 = vmatpush2.bf16.msra.mxu0 0
  %169 = vmatprep.subr.bf16.mxu0 0
  %170 = vmatpush2.bf16.msra.mxu0 0
  %171 = vmatprep.subr.bf16.mxu0 0
  %172 = vmatpush2.bf16.msra.mxu0 0
  %173 = vmatprep.subr.bf16.mxu0 0
  %174 = vmatpush2.bf16.msra.mxu0 0
  %175 = vmatprep.subr.bf16.mxu0 0
  %176 = vmatpush2.bf16.msra.mxu0 0
  %177 = vmatprep.mubr.bf16.mxu0 0
  %178 = vmatmul.mubr.bf16.gmra.mxu0 %v118
  %v179 = vpop.f32.mrf.mxu0
  %v180 = vadd.f32 %v105, %v179
  %v181 = vpop.f32.mrf.mxu0
  %v182 = vpop.f32.mrf.mxu0
  %v183 = vadd.f32 %v105, %v182
  %v184 = vpop.f32.mrf.mxu0
  %185 = vmatprep.mubr.bf16.mxu0 0
  %186 = vmatmul.mubr.bf16.gmra.mxu0 %v121
  %v187 = vpop.f32.mrf.mxu0
  %v188 = vadd.f32 %v105, %v187
  %v189 = vpop.f32.mrf.mxu0
  %v190 = vpop.f32.mrf.mxu0
  %v191 = vadd.f32 %v105, %v190
  %v192 = vpop.f32.mrf.mxu0
  %193 = vmatprep.mubr.bf16.mxu0 0
  %194 = vmatmul.mubr.bf16.gmra.mxu0 %v124
  %v195 = vpop.f32.mrf.mxu0
  %v196 = vadd.f32 %v105, %v195
  %v197 = vpop.f32.mrf.mxu0
  %v198 = vpop.f32.mrf.mxu0
  %v199 = vadd.f32 %v105, %v198
  %v200 = vpop.f32.mrf.mxu0
  %201 = vmatprep.mubr.bf16.mxu0 0
  %202 = vmatmul.mubr.bf16.gmra.mxu0 %v127
  %v203 = vpop.f32.mrf.mxu0
  %v204 = vadd.f32 %v105, %v203
  %v205 = vpop.f32.mrf.mxu0
  %v206 = vpop.f32.mrf.mxu0
  %v207 = vadd.f32 %v105, %v206
  %v208 = vpop.f32.mrf.mxu0
  %209 = vmatprep.mubr.bf16.mxu0 0
  %210 = vmatmul.mubr.bf16.gmra.mxu0 %v130
  %v211 = vpop.f32.mrf.mxu0
  %v212 = vadd.f32 %v105, %v211
  %v213 = vpop.f32.mrf.mxu0
  %v214 = vpop.f32.mrf.mxu0
  %v215 = vadd.f32 %v105, %v214
  %v216 = vpop.f32.mrf.mxu0
  %217 = vmatprep.mubr.bf16.mxu0 0
  %218 = vmatmul.mubr.bf16.gmra.mxu0 %v133
  %v219 = vpop.f32.mrf.mxu0
  %v220 = vadd.f32 %v105, %v219
  %v221 = vpop.f32.mrf.mxu0
  %v222 = vpop.f32.mrf.mxu0
  %v223 = vadd.f32 %v105, %v222
  %v224 = vpop.f32.mrf.mxu0
  %225 = vmatprep.mubr.bf16.mxu0 0
  %226 = vmatmul.mubr.bf16.gmra.mxu0 %v136
  %v227 = vpop.f32.mrf.mxu0
  %v228 = vadd.f32 %v105, %v227
  %v229 = vpop.f32.mrf.mxu0
  %v230 = vpop.f32.mrf.mxu0
  %v231 = vadd.f32 %v105, %v230
  %v232 = vpop.f32.mrf.mxu0
  %233 = vmatprep.mubr.bf16.mxu0 0
  %234 = vmatmul.mubr.bf16.gmra.mxu0 %v139
  %v235 = vpop.f32.mrf.mxu0
  %v236 = vadd.f32 %v105, %v235
  %v237 = vpop.f32.mrf.mxu0
  %v238 = vpop.f32.mrf.mxu0
  %v239 = vadd.f32 %v105, %v238
  %v240 = vpop.f32.mrf.mxu0
  %241 = vdwg.mxu0
  %v242 = vmax.f32 %v180, 0.0
  %v243 = vmax.f32 %v183, 0.0
  %v244 = vmax.f32 %v188, 0.0
  %v245 = vmax.f32 %v191, 0.0
  %v246 = vmax.f32 %v196, 0.0
  %v247 = vmax.f32 %v199, 0.0
  %v248 = vmax.f32 %v204, 0.0
  %v249 = vmax.f32 %v207, 0.0
  %v250 = vmax.f32 %v212, 0.0
  %v251 = vmax.f32 %v215, 0.0
  %v252 = vmax.f32 %v220, 0.0
  %v253 = vmax.f32 %v223, 0.0
  %v254 = vmax.f32 %v228, 0.0
  %v255 = vmax.f32 %v231, 0.0
  %v256 = vmax.f32 %v236, 0.0
  %v257 = vmax.f32 %v239, 0.0
  %v258 = vpack.c.bf16 %v243, %v242
  %v259 = vpack.c.bf16 %v245, %v244
  %v260 = vpack.c.bf16 %v247, %v246
  %v261 = vpack.c.bf16 %v249, %v248
  %v262 = vpack.c.bf16 %v251, %v250
  %v263 = vpack.c.bf16 %v253, %v252
  %v264 = vpack.c.bf16 %v255, %v254
  %v265 = vpack.c.bf16 %v257, %v256
  %v267 = vlaneseq
  %v268 = vshrl.u32 %v267, 7
  %v269 = vsub.s32 0, %v268
  %v270 = vrot.slane %v59, %v269
  %v288 = vunpack.c.l.b16 %v43
  %v289 = vunpack.c.l.b16 %v44
  %v290 = vunpack.c.l.b16 %v45
  %v291 = vunpack.c.l.b16 %v46
  %v292 = vunpack.c.l.b16 %v47
  %v293 = vunpack.c.l.b16 %v48
  %v294 = vunpack.c.l.b16 %v49
  %v295 = vunpack.c.l.b16 %v50
  %v296 = vunpack.c.l.b16 %v51
  %v297 = vunpack.c.l.b16 %v52
  %v298 = vunpack.c.l.b16 %v53
  %v299 = vunpack.c.l.b16 %v54
  %v300 = vunpack.c.l.b16 %v55
  %v301 = vunpack.c.l.b16 %v56
  %v302 = vunpack.c.l.b16 %v57
  %v303 = vunpack.c.l.b16 %v58
  %v304 = vpack.c.b16 %v289, %v288
  %v305 = vpack.c.b16 %v291, %v290
  %v306 = vpack.c.b16 %v293, %v292
  %v307 = vpack.c.b16 %v295, %v294
  %v308 = vpack.c.b16 %v297, %v296
  %v309 = vpack.c.b16 %v299, %v298
  %v310 = vpack.c.b16 %v301, %v300
  %v311 = vpack.c.b16 %v303, %v302
  %320 = vmatprep.subr.bf16.mxu0 0
  %321 = vmatpush1.bf16.msra.mxu0 %v311
  %322 = vmatprep.subr.bf16.mxu0 0
  %323 = vmatpush1.bf16.msra.mxu0 %v310
  %324 = vmatprep.subr.bf16.mxu0 0
  %325 = vmatpush1.bf16.msra.mxu0 %v309
  %326 = vmatprep.subr.bf16.mxu0 0
  %327 = vmatpush1.bf16.msra.mxu0 %v308
  %328 = vmatprep.subr.bf16.mxu0 0
  %329 = vmatpush1.bf16.msra.mxu0 %v307
  %330 = vmatprep.subr.bf16.mxu0 0
  %331 = vmatpush1.bf16.msra.mxu0 %v306
  %332 = vmatprep.subr.bf16.mxu0 0
  %333 = vmatpush1.bf16.msra.mxu0 %v305
  %334 = vmatprep.subr.bf16.mxu0 0
  %335 = vmatpush1.bf16.msra.mxu0 %v304
  %336 = vmatprep.subr.bf16.mxu0 0
  %337 = vmatpush2.bf16.msra.mxu0 0
  %338 = vmatprep.subr.bf16.mxu0 0
  %339 = vmatpush2.bf16.msra.mxu0 0
  %340 = vmatprep.subr.bf16.mxu0 0
  %341 = vmatpush2.bf16.msra.mxu0 0
  %342 = vmatprep.subr.bf16.mxu0 0
  %343 = vmatpush2.bf16.msra.mxu0 0
  %344 = vmatprep.subr.bf16.mxu0 0
  %345 = vmatpush2.bf16.msra.mxu0 0
  %346 = vmatprep.subr.bf16.mxu0 0
  %347 = vmatpush2.bf16.msra.mxu0 0
  %348 = vmatprep.subr.bf16.mxu0 0
  %349 = vmatpush2.bf16.msra.mxu0 0
  %350 = vmatprep.subr.bf16.mxu0 0
  %351 = vmatpush2.bf16.msra.mxu0 0
  %352 = vmatprep.mubr.bf16.mxu0 0
  %353 = vmatmul.mubr.bf16.gmra.mxu0 %v258
  %v354 = vpop.f32.mrf.mxu0
  %v355 = vadd.f32 %v270, %v354
  %v356 = vpop.f32.mrf.mxu0
  %v357 = vpop.f32.mrf.mxu0
  %v358 = vadd.f32 %v270, %v357
  %v359 = vpop.f32.mrf.mxu0
  %360 = vmatprep.mubr.bf16.mxu0 0
  %361 = vmatmul.mubr.bf16.gmra.mxu0 %v259
  %v362 = vpop.f32.mrf.mxu0
  %v363 = vadd.f32 %v270, %v362
  %v364 = vpop.f32.mrf.mxu0
  %v365 = vpop.f32.mrf.mxu0
  %v366 = vadd.f32 %v270, %v365
  %v367 = vpop.f32.mrf.mxu0
  %368 = vmatprep.mubr.bf16.mxu0 0
  %369 = vmatmul.mubr.bf16.gmra.mxu0 %v260
  %v370 = vpop.f32.mrf.mxu0
  %v371 = vadd.f32 %v270, %v370
  %v372 = vpop.f32.mrf.mxu0
  %v373 = vpop.f32.mrf.mxu0
  %v374 = vadd.f32 %v270, %v373
  %v375 = vpop.f32.mrf.mxu0
  %376 = vmatprep.mubr.bf16.mxu0 0
  %377 = vmatmul.mubr.bf16.gmra.mxu0 %v261
  %v378 = vpop.f32.mrf.mxu0
  %v379 = vadd.f32 %v270, %v378
  %v380 = vpop.f32.mrf.mxu0
  %v381 = vpop.f32.mrf.mxu0
  %v382 = vadd.f32 %v270, %v381
  %v383 = vpop.f32.mrf.mxu0
  %384 = vmatprep.mubr.bf16.mxu0 0
  %385 = vmatmul.mubr.bf16.gmra.mxu0 %v262
  %v386 = vpop.f32.mrf.mxu0
  %v387 = vadd.f32 %v270, %v386
  %v388 = vpop.f32.mrf.mxu0
  %v389 = vpop.f32.mrf.mxu0
  %v390 = vadd.f32 %v270, %v389
  %v391 = vpop.f32.mrf.mxu0
  %392 = vmatprep.mubr.bf16.mxu0 0
  %393 = vmatmul.mubr.bf16.gmra.mxu0 %v263
  %v394 = vpop.f32.mrf.mxu0
  %v395 = vadd.f32 %v270, %v394
  %v396 = vpop.f32.mrf.mxu0
  %v397 = vpop.f32.mrf.mxu0
  %v398 = vadd.f32 %v270, %v397
  %v399 = vpop.f32.mrf.mxu0
  %400 = vmatprep.mubr.bf16.mxu0 0
  %401 = vmatmul.mubr.bf16.gmra.mxu0 %v264
  %v402 = vpop.f32.mrf.mxu0
  %v403 = vadd.f32 %v270, %v402
  %v404 = vpop.f32.mrf.mxu0
  %v405 = vpop.f32.mrf.mxu0
  %v406 = vadd.f32 %v270, %v405
  %v407 = vpop.f32.mrf.mxu0
  %408 = vmatprep.mubr.bf16.mxu0 0
  %409 = vmatmul.mubr.bf16.gmra.mxu0 %v265
  %v410 = vpop.f32.mrf.mxu0
  %v411 = vadd.f32 %v270, %v410
  %v412 = vpop.f32.mrf.mxu0
  %v413 = vpop.f32.mrf.mxu0
  %v414 = vadd.f32 %v270, %v413
  %v415 = vpop.f32.mrf.mxu0
  %416 = vdwg.mxu0
  %v417 = vmax.f32 %v355, 0.0
  %v418 = vmax.f32 %v358, 0.0
  %v419 = vmax.f32 %v363, 0.0
  %v420 = vmax.f32 %v366, 0.0
  %v421 = vmax.f32 %v371, 0.0
  %v422 = vmax.f32 %v374, 0.0
  %v423 = vmax.f32 %v379, 0.0
  %v424 = vmax.f32 %v382, 0.0
  %v425 = vmax.f32 %v387, 0.0
  %v426 = vmax.f32 %v390, 0.0
  %v427 = vmax.f32 %v395, 0.0
  %v428 = vmax.f32 %v398, 0.0
  %v429 = vmax.f32 %v403, 0.0
  %v430 = vmax.f32 %v406, 0.0
  %v431 = vmax.f32 %v411, 0.0
  %v432 = vmax.f32 %v414, 0.0
  %v433 = vpack.c.bf16 %v418, %v417
  %v434 = vpack.c.bf16 %v420, %v419
  %v435 = vpack.c.bf16 %v422, %v421
  %v436 = vpack.c.bf16 %v424, %v423
  %v437 = vpack.c.bf16 %v426, %v425
  %v438 = vpack.c.bf16 %v428, %v427
  %v439 = vpack.c.bf16 %v430, %v429
  %v440 = vpack.c.bf16 %v432, %v431
  %v442 = vlaneseq
  %v443 = vshrl.u32 %v442, 7
  %v444 = vsub.s32 0, %v443
  %v445 = vrot.slane %v68, %v444
  %v455 = vunpack.c.l.b16 %v60
  %v456 = vunpack.c.l.b16 %v61
  %v457 = vunpack.c.l.b16 %v62
  %v458 = vunpack.c.l.b16 %v63
  %v459 = vunpack.c.l.b16 %v64
  %v460 = vunpack.c.l.b16 %v65
  %v461 = vunpack.c.l.b16 %v66
  %v462 = vunpack.c.l.b16 %v67
  %v463 = vpack.c.b16 %v456, %v455
  %v464 = vpack.c.b16 %v458, %v457
  %v465 = vpack.c.b16 %v460, %v459
  %v466 = vpack.c.b16 %v462, %v461
  %vm471 = vcmask 523264
  %v473 = vsel %vm471, %v433, 0
  %v476 = vsel %vm471, %v434, 0
  %v479 = vsel %vm471, %v435, 0
  %v482 = vsel %vm471, %v436, 0
  %v485 = vsel %vm471, %v437, 0
  %v488 = vsel %vm471, %v438, 0
  %v491 = vsel %vm471, %v439, 0
  %v494 = vsel %vm471, %v440, 0
  %496 = vmatprep.subr.bf16.mxu0 0
  %497 = vmatpush1.bf16.msra.mxu0 0
  %498 = vmatprep.subr.bf16.mxu0 0
  %499 = vmatpush1.bf16.msra.mxu0 0
  %500 = vmatprep.subr.bf16.mxu0 0
  %501 = vmatpush1.bf16.msra.mxu0 0
  %502 = vmatprep.subr.bf16.mxu0 0
  %503 = vmatpush1.bf16.msra.mxu0 0
  %504 = vmatprep.subr.bf16.mxu0 0
  %505 = vmatpush1.bf16.msra.mxu0 %v466
  %506 = vmatprep.subr.bf16.mxu0 0
  %507 = vmatpush1.bf16.msra.mxu0 %v465
  %508 = vmatprep.subr.bf16.mxu0 0
  %509 = vmatpush1.bf16.msra.mxu0 %v464
  %510 = vmatprep.subr.bf16.mxu0 0
  %511 = vmatpush1.bf16.msra.mxu0 %v463
  %512 = vmatprep.subr.bf16.mxu0 0
  %513 = vmatpush2.bf16.msra.mxu0 0
  %514 = vmatprep.subr.bf16.mxu0 0
  %515 = vmatpush2.bf16.msra.mxu0 0
  %516 = vmatprep.subr.bf16.mxu0 0
  %517 = vmatpush2.bf16.msra.mxu0 0
  %518 = vmatprep.subr.bf16.mxu0 0
  %519 = vmatpush2.bf16.msra.mxu0 0
  %520 = vmatprep.subr.bf16.mxu0 0
  %521 = vmatpush2.bf16.msra.mxu0 0
  %522 = vmatprep.subr.bf16.mxu0 0
  %523 = vmatpush2.bf16.msra.mxu0 0
  %524 = vmatprep.subr.bf16.mxu0 0
  %525 = vmatpush2.bf16.msra.mxu0 0
  %526 = vmatprep.subr.bf16.mxu0 0
  %527 = vmatpush2.bf16.msra.mxu0 0
  %528 = vmatprep.mubr.bf16.mxu0 0
  %529 = vmatmul.mubr.bf16.gmra.mxu0 %v473
  %v530 = vpop.f32.mrf.mxu0
  %v531 = vadd.f32 %v445, %v530
  %v532 = vpop.f32.mrf.mxu0
  %v533 = vpop.f32.mrf.mxu0
  %v534 = vadd.f32 %v445, %v533
  %v535 = vpop.f32.mrf.mxu0
  %536 = vmatprep.mubr.bf16.mxu0 0
  %537 = vmatmul.mubr.bf16.gmra.mxu0 %v476
  %v538 = vpop.f32.mrf.mxu0
  %v539 = vadd.f32 %v445, %v538
  %v540 = vpop.f32.mrf.mxu0
  %v541 = vpop.f32.mrf.mxu0
  %v542 = vadd.f32 %v445, %v541
  %v543 = vpop.f32.mrf.mxu0
  %544 = vmatprep.mubr.bf16.mxu0 0
  %545 = vmatmul.mubr.bf16.gmra.mxu0 %v479
  %v546 = vpop.f32.mrf.mxu0
  %v547 = vadd.f32 %v445, %v546
  %v548 = vpop.f32.mrf.mxu0
  %v549 = vpop.f32.mrf.mxu0
  %v550 = vadd.f32 %v445, %v549
  %v551 = vpop.f32.mrf.mxu0
  %552 = vmatprep.mubr.bf16.mxu0 0
  %553 = vmatmul.mubr.bf16.gmra.mxu0 %v482
  %v554 = vpop.f32.mrf.mxu0
  %v555 = vadd.f32 %v445, %v554
  %v556 = vpop.f32.mrf.mxu0
  %v557 = vpop.f32.mrf.mxu0
  %v558 = vadd.f32 %v445, %v557
  %v559 = vpop.f32.mrf.mxu0
  %560 = vmatprep.mubr.bf16.mxu0 0
  %561 = vmatmul.mubr.bf16.gmra.mxu0 %v485
  %v562 = vpop.f32.mrf.mxu0
  %v563 = vadd.f32 %v445, %v562
  %v564 = vpop.f32.mrf.mxu0
  %v565 = vpop.f32.mrf.mxu0
  %v566 = vadd.f32 %v445, %v565
  %v567 = vpop.f32.mrf.mxu0
  %568 = vmatprep.mubr.bf16.mxu0 0
  %569 = vmatmul.mubr.bf16.gmra.mxu0 %v488
  %v570 = vpop.f32.mrf.mxu0
  %v571 = vadd.f32 %v445, %v570
  %v572 = vpop.f32.mrf.mxu0
  %v573 = vpop.f32.mrf.mxu0
  %v574 = vadd.f32 %v445, %v573
  %v575 = vpop.f32.mrf.mxu0
  %576 = vmatprep.mubr.bf16.mxu0 0
  %577 = vmatmul.mubr.bf16.gmra.mxu0 %v491
  %v578 = vpop.f32.mrf.mxu0
  %v579 = vadd.f32 %v445, %v578
  %v580 = vpop.f32.mrf.mxu0
  %v581 = vpop.f32.mrf.mxu0
  %v582 = vadd.f32 %v445, %v581
  %v583 = vpop.f32.mrf.mxu0
  %584 = vmatprep.mubr.bf16.mxu0 0
  %585 = vmatmul.mubr.bf16.gmra.mxu0 %v494
  %v586 = vpop.f32.mrf.mxu0
  %v587 = vadd.f32 %v445, %v586
  %v588 = vpop.f32.mrf.mxu0
  %v589 = vpop.f32.mrf.mxu0
  %v590 = vadd.f32 %v445, %v589
  %v591 = vpop.f32.mrf.mxu0
  %592 = vdwg.mxu0
  %v593 = vmax.f32 %v531, 0.0
  %v594 = vmax.f32 %v534, 0.0
  %v595 = vmax.f32 %v539, 0.0
  %v596 = vmax.f32 %v542, 0.0
  %v597 = vmax.f32 %v547, 0.0
  %v598 = vmax.f32 %v550, 0.0
  %v599 = vmax.f32 %v555, 0.0
  %v600 = vmax.f32 %v558, 0.0
  %v601 = vmax.f32 %v563, 0.0
  %v602 = vmax.f32 %v566, 0.0
  %v603 = vmax.f32 %v571, 0.0
  %v604 = vmax.f32 %v574, 0.0
  %v605 = vmax.f32 %v579, 0.0
  %v606 = vmax.f32 %v582, 0.0
  %v607 = vmax.f32 %v587, 0.0
  %v608 = vmax.f32 %v590, 0.0
  %v609 = vpack.c.bf16 %v594, %v593
  %v610 = vpack.c.bf16 %v596, %v595
  %v611 = vpack.c.bf16 %v598, %v597
  %v612 = vpack.c.bf16 %v600, %v599
  %v613 = vpack.c.bf16 %v602, %v601
  %v614 = vpack.c.bf16 %v604, %v603
  %v615 = vpack.c.bf16 %v606, %v605
  %v616 = vpack.c.bf16 %v608, %v607
  %v618 = vlaneseq
  %v619 = vshrl.u32 %v618, 7
  %v620 = vsub.s32 0, %v619
  %v621 = vrot.slane %v73, %v620
  %v627 = vunpack.c.l.b16 %v69
  %v628 = vunpack.c.l.b16 %v70
  %v629 = vunpack.c.l.b16 %v71
  %v630 = vunpack.c.l.b16 %v72
  %v631 = vpack.c.b16 %v628, %v627
  %v632 = vpack.c.b16 %v630, %v629
  %vm635 = vcmask 261120
  %v637 = vsel %vm635, %v609, 0
  %v640 = vsel %vm635, %v610, 0
  %v643 = vsel %vm635, %v611, 0
  %v646 = vsel %vm635, %v612, 0
  %v649 = vsel %vm635, %v613, 0
  %v652 = vsel %vm635, %v614, 0
  %v655 = vsel %vm635, %v615, 0
  %v658 = vsel %vm635, %v616, 0
  %660 = vmatprep.subr.bf16.mxu0 0
  %661 = vmatpush1.bf16.msra.mxu0 0
  %662 = vmatprep.subr.bf16.mxu0 0
  %663 = vmatpush1.bf16.msra.mxu0 0
  %664 = vmatprep.subr.bf16.mxu0 0
  %665 = vmatpush1.bf16.msra.mxu0 0
  %666 = vmatprep.subr.bf16.mxu0 0
  %667 = vmatpush1.bf16.msra.mxu0 0
  %668 = vmatprep.subr.bf16.mxu0 0
  %669 = vmatpush1.bf16.msra.mxu0 0
  %670 = vmatprep.subr.bf16.mxu0 0
  %671 = vmatpush1.bf16.msra.mxu0 0
  %672 = vmatprep.subr.bf16.mxu0 0
  %673 = vmatpush1.bf16.msra.mxu0 %v632
  %674 = vmatprep.subr.bf16.mxu0 0
  %675 = vmatpush1.bf16.msra.mxu0 %v631
  %676 = vmatprep.subr.bf16.mxu0 0
  %677 = vmatpush2.bf16.msra.mxu0 0
  %678 = vmatprep.subr.bf16.mxu0 0
  %679 = vmatpush2.bf16.msra.mxu0 0
  %680 = vmatprep.subr.bf16.mxu0 0
  %681 = vmatpush2.bf16.msra.mxu0 0
  %682 = vmatprep.subr.bf16.mxu0 0
  %683 = vmatpush2.bf16.msra.mxu0 0
  %684 = vmatprep.subr.bf16.mxu0 0
  %685 = vmatpush2.bf16.msra.mxu0 0
  %686 = vmatprep.subr.bf16.mxu0 0
  %687 = vmatpush2.bf16.msra.mxu0 0
  %688 = vmatprep.subr.bf16.mxu0 0
  %689 = vmatpush2.bf16.msra.mxu0 0
  %690 = vmatprep.subr.bf16.mxu0 0
  %691 = vmatpush2.bf16.msra.mxu0 0
  %692 = vmatprep.mubr.bf16.mxu0 0
  %693 = vmatmul.mubr.bf16.gmra.mxu0 %v637
  %v694 = vpop.f32.mrf.mxu0
  %v695 = vadd.f32 %v621, %v694
  %v696 = vpop.f32.mrf.mxu0
  %v697 = vpop.f32.mrf.mxu0
  %v698 = vadd.f32 %v621, %v697
  %v699 = vpop.f32.mrf.mxu0
  %700 = vmatprep.mubr.bf16.mxu0 0
  %701 = vmatmul.mubr.bf16.gmra.mxu0 %v640
  %v702 = vpop.f32.mrf.mxu0
  %v703 = vadd.f32 %v621, %v702
  %v704 = vpop.f32.mrf.mxu0
  %v705 = vpop.f32.mrf.mxu0
  %v706 = vadd.f32 %v621, %v705
  %v707 = vpop.f32.mrf.mxu0
  %708 = vmatprep.mubr.bf16.mxu0 0
  %709 = vmatmul.mubr.bf16.gmra.mxu0 %v643
  %v710 = vpop.f32.mrf.mxu0
  %v711 = vadd.f32 %v621, %v710
  %v712 = vpop.f32.mrf.mxu0
  %v713 = vpop.f32.mrf.mxu0
  %v714 = vadd.f32 %v621, %v713
  %v715 = vpop.f32.mrf.mxu0
  %716 = vmatprep.mubr.bf16.mxu0 0
  %717 = vmatmul.mubr.bf16.gmra.mxu0 %v646
  %v718 = vpop.f32.mrf.mxu0
  %v719 = vadd.f32 %v621, %v718
  %v720 = vpop.f32.mrf.mxu0
  %v721 = vpop.f32.mrf.mxu0
  %v722 = vadd.f32 %v621, %v721
  %v723 = vpop.f32.mrf.mxu0
  %724 = vmatprep.mubr.bf16.mxu0 0
  %725 = vmatmul.mubr.bf16.gmra.mxu0 %v649
  %v726 = vpop.f32.mrf.mxu0
  %v727 = vadd.f32 %v621, %v726
  %v728 = vpop.f32.mrf.mxu0
  %v729 = vpop.f32.mrf.mxu0
  %v730 = vadd.f32 %v621, %v729
  %v731 = vpop.f32.mrf.mxu0
  %732 = vmatprep.mubr.bf16.mxu0 0
  %733 = vmatmul.mubr.bf16.gmra.mxu0 %v652
  %v734 = vpop.f32.mrf.mxu0
  %v735 = vadd.f32 %v621, %v734
  %v736 = vpop.f32.mrf.mxu0
  %v737 = vpop.f32.mrf.mxu0
  %v738 = vadd.f32 %v621, %v737
  %v739 = vpop.f32.mrf.mxu0
  %740 = vmatprep.mubr.bf16.mxu0 0
  %741 = vmatmul.mubr.bf16.gmra.mxu0 %v655
  %v742 = vpop.f32.mrf.mxu0
  %v743 = vadd.f32 %v621, %v742
  %v744 = vpop.f32.mrf.mxu0
  %v745 = vpop.f32.mrf.mxu0
  %v746 = vadd.f32 %v621, %v745
  %v747 = vpop.f32.mrf.mxu0
  %748 = vmatprep.mubr.bf16.mxu0 0
  %749 = vmatmul.mubr.bf16.gmra.mxu0 %v658
  %v750 = vpop.f32.mrf.mxu0
  %v751 = vadd.f32 %v621, %v750
  %v752 = vpop.f32.mrf.mxu0
  %v753 = vpop.f32.mrf.mxu0
  %v754 = vadd.f32 %v621, %v753
  %v755 = vpop.f32.mrf.mxu0
  %756 = vdwg.mxu0
  %v757 = vmax.f32 %v695, 0.0
  %v758 = vmax.f32 %v698, 0.0
  %v759 = vmax.f32 %v703, 0.0
  %v760 = vmax.f32 %v706, 0.0
  %v761 = vmax.f32 %v711, 0.0
  %v762 = vmax.f32 %v714, 0.0
  %v763 = vmax.f32 %v719, 0.0
  %v764 = vmax.f32 %v722, 0.0
  %v765 = vmax.f32 %v727, 0.0
  %v766 = vmax.f32 %v730, 0.0
  %v767 = vmax.f32 %v735, 0.0
  %v768 = vmax.f32 %v738, 0.0
  %v769 = vmax.f32 %v743, 0.0
  %v770 = vmax.f32 %v746, 0.0
  %v771 = vmax.f32 %v751, 0.0
  %v772 = vmax.f32 %v754, 0.0
  %v773 = vpack.c.bf16 %v758, %v757
  %v774 = vpack.c.bf16 %v760, %v759
  %v775 = vpack.c.bf16 %v762, %v761
  %v776 = vpack.c.bf16 %v764, %v763
  %v777 = vpack.c.bf16 %v766, %v765
  %v778 = vpack.c.bf16 %v768, %v767
  %v779 = vpack.c.bf16 %v770, %v769
  %v780 = vpack.c.bf16 %v772, %v771
  %v782 = vlaneseq
  %v783 = vshrl.u32 %v782, 7
  %v784 = vsub.s32 0, %v783
  %v785 = vrot.slane %v76, %v784
  %v789 = vunpack.c.l.b16 %v74
  %v790 = vunpack.c.l.b16 %v75
  %v791 = vpack.c.b16 %v790, %v789
  %vm793 = vcmask 130048
  %v795 = vsel %vm793, %v773, 0
  %v798 = vsel %vm793, %v774, 0
  %v801 = vsel %vm793, %v775, 0
  %v804 = vsel %vm793, %v776, 0
  %v807 = vsel %vm793, %v777, 0
  %v810 = vsel %vm793, %v778, 0
  %v813 = vsel %vm793, %v779, 0
  %v816 = vsel %vm793, %v780, 0
  %818 = vmatprep.subr.bf16.mxu0 0
  %819 = vmatpush1.bf16.msra.mxu0 0
  %820 = vmatprep.subr.bf16.mxu0 0
  %821 = vmatpush1.bf16.msra.mxu0 0
  %822 = vmatprep.subr.bf16.mxu0 0
  %823 = vmatpush1.bf16.msra.mxu0 0
  %824 = vmatprep.subr.bf16.mxu0 0
  %825 = vmatpush1.bf16.msra.mxu0 0
  %826 = vmatprep.subr.bf16.mxu0 0
  %827 = vmatpush1.bf16.msra.mxu0 0
  %828 = vmatprep.subr.bf16.mxu0 0
  %829 = vmatpush1.bf16.msra.mxu0 0
  %830 = vmatprep.subr.bf16.mxu0 0
  %831 = vmatpush1.bf16.msra.mxu0 0
  %832 = vmatprep.subr.bf16.mxu0 0
  %833 = vmatpush1.bf16.msra.mxu0 %v791
  %834 = vmatprep.subr.bf16.mxu0 0
  %835 = vmatpush2.bf16.msra.mxu0 0
  %836 = vmatprep.subr.bf16.mxu0 0
  %837 = vmatpush2.bf16.msra.mxu0 0
  %838 = vmatprep.subr.bf16.mxu0 0
  %839 = vmatpush2.bf16.msra.mxu0 0
  %840 = vmatprep.subr.bf16.mxu0 0
  %841 = vmatpush2.bf16.msra.mxu0 0
  %842 = vmatprep.subr.bf16.mxu0 0
  %843 = vmatpush2.bf16.msra.mxu0 0
  %844 = vmatprep.subr.bf16.mxu0 0
  %845 = vmatpush2.bf16.msra.mxu0 0
  %846 = vmatprep.subr.bf16.mxu0 0
  %847 = vmatpush2.bf16.msra.mxu0 0
  %848 = vmatprep.subr.bf16.mxu0 0
  %849 = vmatpush2.bf16.msra.mxu0 0
  %850 = vmatprep.mubr.bf16.mxu0 0
  %851 = vmatmul.mubr.bf16.gmra.mxu0 %v795
  %v852 = vpop.f32.mrf.mxu0
  %v853 = vadd.f32 %v785, %v852
  %v854 = vpop.f32.mrf.mxu0
  %v855 = vpop.f32.mrf.mxu0
  %v856 = vadd.f32 %v785, %v855
  %v857 = vpop.f32.mrf.mxu0
  %858 = vmatprep.mubr.bf16.mxu0 0
  %859 = vmatmul.mubr.bf16.gmra.mxu0 %v798
  %v860 = vpop.f32.mrf.mxu0
  %v861 = vadd.f32 %v785, %v860
  %v862 = vpop.f32.mrf.mxu0
  %v863 = vpop.f32.mrf.mxu0
  %v864 = vadd.f32 %v785, %v863
  %v865 = vpop.f32.mrf.mxu0
  %866 = vmatprep.mubr.bf16.mxu0 0
  %867 = vmatmul.mubr.bf16.gmra.mxu0 %v801
  %v868 = vpop.f32.mrf.mxu0
  %v869 = vadd.f32 %v785, %v868
  %v870 = vpop.f32.mrf.mxu0
  %v871 = vpop.f32.mrf.mxu0
  %v872 = vadd.f32 %v785, %v871
  %v873 = vpop.f32.mrf.mxu0
  %874 = vmatprep.mubr.bf16.mxu0 0
  %875 = vmatmul.mubr.bf16.gmra.mxu0 %v804
  %v876 = vpop.f32.mrf.mxu0
  %v877 = vadd.f32 %v785, %v876
  %v878 = vpop.f32.mrf.mxu0
  %v879 = vpop.f32.mrf.mxu0
  %v880 = vadd.f32 %v785, %v879
  %v881 = vpop.f32.mrf.mxu0
  %882 = vmatprep.mubr.bf16.mxu0 0
  %883 = vmatmul.mubr.bf16.gmra.mxu0 %v807
  %v884 = vpop.f32.mrf.mxu0
  %v885 = vadd.f32 %v785, %v884
  %v886 = vpop.f32.mrf.mxu0
  %v887 = vpop.f32.mrf.mxu0
  %v888 = vadd.f32 %v785, %v887
  %v889 = vpop.f32.mrf.mxu0
  %890 = vmatprep.mubr.bf16.mxu0 0
  %891 = vmatmul.mubr.bf16.gmra.mxu0 %v810
  %v892 = vpop.f32.mrf.mxu0
  %v893 = vadd.f32 %v785, %v892
  %v894 = vpop.f32.mrf.mxu0
  %v895 = vpop.f32.mrf.mxu0
  %v896 = vadd.f32 %v785, %v895
  %v897 = vpop.f32.mrf.mxu0
  %898 = vmatprep.mubr.bf16.mxu0 0
  %899 = vmatmul.mubr.bf16.gmra.mxu0 %v813
  %v900 = vpop.f32.mrf.mxu0
  %v901 = vadd.f32 %v785, %v900
  %v902 = vpop.f32.mrf.mxu0
  %v903 = vpop.f32.mrf.mxu0
  %v904 = vadd.f32 %v785, %v903
  %v905 = vpop.f32.mrf.mxu0
  %906 = vmatprep.mubr.bf16.mxu0 0
  %907 = vmatmul.mubr.bf16.gmra.mxu0 %v816
  %v908 = vpop.f32.mrf.mxu0
  %v909 = vadd.f32 %v785, %v908
  %v910 = vpop.f32.mrf.mxu0
  %v911 = vpop.f32.mrf.mxu0
  %v912 = vadd.f32 %v785, %v911
  %v913 = vpop.f32.mrf.mxu0
  %914 = vdwg.mxu0
  %vm915 = vcmask 31744
  %916 = vst.msk [vmem:[%s11] sm:$0xff] %vm915, %v853
  %917 = vst.msk [vmem:[%s11 + $0x8] sm:$0xff] %vm915, %v856
  %918 = vst.msk [vmem:[%s11 + $0x10] sm:$0xff] %vm915, %v861
  %919 = vst.msk [vmem:[%s11 + $0x18] sm:$0xff] %vm915, %v864
  %920 = vst.msk [vmem:[%s11 + $0x20] sm:$0xff] %vm915, %v869
  %921 = vst.msk [vmem:[%s11 + $0x28] sm:$0xff] %vm915, %v872
  %922 = vst.msk [vmem:[%s11 + $0x30] sm:$0xff] %vm915, %v877
  %923 = vst.msk [vmem:[%s11 + $0x38] sm:$0xff] %vm915, %v880
  %924 = vst.msk [vmem:[%s11 + $0x40] sm:$0xff] %vm915, %v885
  %925 = vst.msk [vmem:[%s11 + $0x48] sm:$0xff] %vm915, %v888
  %926 = vst.msk [vmem:[%s11 + $0x50] sm:$0xff] %vm915, %v893
  %927 = vst.msk [vmem:[%s11 + $0x58] sm:$0xff] %vm915, %v896
  %928 = vst.msk [vmem:[%s11 + $0x60] sm:$0xff] %vm915, %v901
  %929 = vst.msk [vmem:[%s11 + $0x68] sm:$0xff] %vm915, %v904
  %930 = vst.msk [vmem:[%s11 + $0x70] sm:$0xff] %vm915, %v909
  %931 = vst.msk [vmem:[%s11 + $0x78] sm:$0xff] %vm915, %v912
  // Predicated region
  $region46: #{tpu_custom_call.1} parent=0 // pred_check
    _
  $region47: #{tpu_custom_call.1} parent=0 // pred_check_branch
    %933 = sbr.rel (0) target = $region49
  $region48: #{tpu_custom_call.1} parent=0 // pred_region
    _
  $region49: #{tpu_custom_call.1} parent=0 // pred_fallthru
    _
  // Predicated region
  $region50: #{tpu_custom_call.1} parent=0 // pred_check
    _
  $region51: #{tpu_custom_call.1} parent=0 // pred_check_branch
    %935 = sbr.rel (0) target = $region53
  $region52: #{tpu_custom_call.1} parent=0 // pred_region
    _
  $region53: #{tpu_custom_call.1} parent=0 // pred_fallthru
    _

</llo_original>
